<compile_context>
chip_gen: v7x
topology: tpu7x:2x2x1
jax: 0.10.0
libtpu: 0.0.40
codegen_flags: <defaults>
</compile_context>

<pallas_src>
import functools

import jax
import jax.numpy as jnp
from jax import lax
from jax.experimental import pallas as pl
from jax.experimental.pallas import tpu as pltpu

_GCN_IN, _GCN_HID, _GCN_OUT = 6, 12, 4
_FC1_OUT, _FC2_OUT = 32 - _GCN_OUT, 32          # 28, 32


def _round_up(x, m):
    return (x + m - 1) // m * m


def _weight_layout(num_feats):
    """Row offset of each (fused) weight in the packed slab (8-row aligned)."""
    entries = (("wg1", _GCN_IN), ("wg2", _GCN_HID), ("wg4w2b", _GCN_HID),
               ("w1", num_feats), ("w2a", _FC1_OUT), ("w3", _FC2_OUT))
    offs, r = {}, 0
    for name, rows in entries:
        offs[name] = r
        r = _round_up(r + rows, 8)
    return offs, r


def _fc_model_graph_kernel(adj_t_ref, xg_ref, x_ref, w_ref, b_ref, out_ref,
                           *, offs, num_feats):
    f32 = jnp.float32

    def w(name, rows, cols):
        r0 = offs[name]
        return w_ref[r0:r0 + rows, 0:cols]            # static ref slice (free view)

    # ---- DGL GraphConv normalization, in-kernel (norm='both', degree clamp >=1)
    adj_t = adj_t_ref[...]                                               # (N,N) [dst,src]
    out_deg = jnp.maximum(jnp.sum(adj_t, axis=0, keepdims=True), 1.0)    # (1,N) per src
    in_deg = jnp.maximum(jnp.sum(adj_t, axis=1, keepdims=True), 1.0)     # (N,1) per dst
    a_hat = adj_t * lax.rsqrt(out_deg) * lax.rsqrt(in_deg)               # (N,N)

    # ---- GCN: conv1 -> relu -> conv2 -> relu -> (conv4 folded into fc2) ----
    h = xg_ref[...]                                                      # (N, 6)
    h = jnp.dot(a_hat, jnp.dot(h, w("wg1", _GCN_IN, _GCN_HID),
                               preferred_element_type=f32),
                preferred_element_type=f32) + b_ref[0:1, 0:_GCN_HID]
    h = jnp.maximum(h, 0.0)                                              # (N, 12)
    h = jnp.dot(a_hat, jnp.dot(h, w("wg2", _GCN_HID, _GCN_HID),
                               preferred_element_type=f32),
                preferred_element_type=f32) + b_ref[1:2, 0:_GCN_HID]
    h = jnp.maximum(h, 0.0)                                              # (N, 12)
    # mean_nodes(conv4(h)) @ W2b == (mean_rows(a_hat) @ h) @ (Wg4 @ W2b); bias folded into b2.
    r = jnp.mean(a_hat, axis=0, keepdims=True)                           # (1, N)
    g = jnp.dot(jnp.dot(r, h, preferred_element_type=f32),
                w("wg4w2b", _GCN_HID, _FC2_OUT),
                preferred_element_type=f32)                              # (1, 32)

    # ---- FC path ----
    z = jnp.dot(x_ref[...], w("w1", num_feats, _FC1_OUT),
                preferred_element_type=f32) + b_ref[2:3, 0:_FC1_OUT]
    z = jnp.maximum(z, 0.0)                                              # (1, 28)
    # fc2(cat(z, graph_state)) == z @ W2[:28] + graph_state @ W2[28:] + b2
    z = (jnp.dot(z, w("w2a", _FC1_OUT, _FC2_OUT), preferred_element_type=f32)
         + g + b_ref[3:4, 0:_FC2_OUT])                                   # (1, 32)
    z = jnp.maximum(z, 0.0)
    # fc3 with lane-padded weight/bias -> lane-dense (1,128) store.
    out_ref[...] = (jnp.dot(z, w("w3", _FC2_OUT, 128), preferred_element_type=f32)
                    + b_ref[4:5, :])


def pack_params(params, num_feats, out_chs):
    """Fold conv4 into fc2 and pack every weight/bias into two VMEM slabs."""
    offs, n_rows = _weight_layout(num_feats)

    wg4w2b = jnp.dot(params["wg4"], params["w2b"])                 # (12, 32)
    b2f = params["b2"] + jnp.dot(params["bg4"], params["w2b"])     # (1, 32)

    w_slab = jnp.zeros((n_rows, 128), jnp.float32)
    for name, wmat in (("wg1", params["wg1"]), ("wg2", params["wg2"]),
                       ("wg4w2b", wg4w2b), ("w1", params["w1"]),
                       ("w2a", params["w2a"]), ("w3", params["w3"])):
        r0 = offs[name]
        w_slab = w_slab.at[r0:r0 + wmat.shape[0], :wmat.shape[1]].set(wmat)

    b_slab = jnp.zeros((8, 128), jnp.float32)
    b_slab = b_slab.at[0, :_GCN_HID].set(params["bg1"][0])
    b_slab = b_slab.at[1, :_GCN_HID].set(params["bg2"][0])
    b_slab = b_slab.at[2, :_FC1_OUT].set(params["b1"][0])
    b_slab = b_slab.at[3, :_FC2_OUT].set(b2f[0])
    b_slab = b_slab.at[4, :out_chs].set(params["b3"][0])
    return w_slab, b_slab


def make_forward(num_feats, out_chs):
    offs, _ = _weight_layout(num_feats)
    kernel = functools.partial(_fc_model_graph_kernel, offs=offs, num_feats=num_feats)
    vmem = pl.BlockSpec(memory_space=pltpu.MemorySpace.VMEM)
    call = pl.pallas_call(
        kernel,
        out_shape=jax.ShapeDtypeStruct((1, 128), jnp.float32),
        in_specs=[vmem] * 5,
        out_specs=vmem,
    )

    @jax.jit
    def forward(x, node_feats, adj, w_slab, b_slab):
        # adj[src, dst] handed to the kernel transposed so the kernel itself
        # needs no XLU transpose; all normalization happens in-kernel.
        adj_t = adj.astype(jnp.float32).T
        x2d = x.reshape(1, -1).astype(jnp.float32)
        out = call(adj_t, node_feats.astype(jnp.float32), x2d, w_slab, b_slab)
        return out[0, :out_chs]

    return forward


def init_params(key, num_feats, out_chs):
    """Deterministic synthetic init (PyTorch-Linear-style uniform bounds).
    NOTE: weights are stored (in, out); importing real PyTorch checkpoints
    ((out, in) layout) requires a transpose."""
    def linear(k, fan_in, fan_out):
        bound = 1.0 / jnp.sqrt(jnp.float32(fan_in))
        kw, kb = jax.random.split(k)
        wmat = jax.random.uniform(kw, (fan_in, fan_out), jnp.float32, -bound, bound)
        bvec = jax.random.uniform(kb, (1, fan_out), jnp.float32, -bound, bound)
        return wmat, bvec

    ks = jax.random.split(key, 7)
    wg1, bg1 = linear(ks[0], _GCN_IN, _GCN_HID)     # GCN conv1
    wg2, bg2 = linear(ks[1], _GCN_HID, _GCN_HID)    # GCN conv2
    wg4, bg4 = linear(ks[2], _GCN_HID, _GCN_OUT)    # GCN conv4 (conv3 unused in forward)
    w1, b1 = linear(ks[3], num_feats, _FC1_OUT)     # fc1
    w2, b2 = linear(ks[4], 32, _FC2_OUT)            # fc2
    w3, b3 = linear(ks[5], 32, out_chs)             # fc3
    return {
        "wg1": wg1, "bg1": bg1, "wg2": wg2, "bg2": bg2, "wg4": wg4, "bg4": bg4,
        "w1": w1, "b1": b1,
        "w2a": w2[:_FC1_OUT, :], "w2b": w2[_FC1_OUT:, :], "b2": b2,
        "w3": w3, "b3": b3,
    }


def reference_forward(x, node_feats, adj, params):
    """Plain-JAX reference mirroring the PyTorch module (unfused)."""
    adj = adj.astype(jnp.float32)
    out_deg = jnp.maximum(adj.sum(axis=1), 1.0)
    in_deg = jnp.maximum(adj.sum(axis=0), 1.0)
    a_hat = (adj.T * (1.0 / jnp.sqrt(out_deg))[None, :]
             * (1.0 / jnp.sqrt(in_deg))[:, None])
    h = node_feats
    h = jnp.maximum(a_hat @ (h @ params["wg1"]) + params["bg1"], 0.0)
    h = jnp.maximum(a_hat @ (h @ params["wg2"]) + params["bg2"], 0.0)
    h = a_hat @ (h @ params["wg4"]) + params["bg4"]
    graph_state = jnp.mean(h, axis=0, keepdims=True)
    z = jnp.maximum(x.reshape(1, -1) @ params["w1"] + params["b1"], 0.0)
    z = jnp.maximum(z @ params["w2a"] + graph_state @ params["w2b"] + params["b2"], 0.0)
    z = z @ params["w3"] + params["b3"]
    return z[0]


if __name__ == "__main__":
    num_feats = 24     # FcModelGraph numFeats
    out_chs = 6        # FcModelGraph outChs
    n_nodes = 12       # graph size (GCN node features are 6-dim per __init__)

    key = jax.random.PRNGKey(0)
    k_par, k_x, k_feat, k_adj = jax.random.split(key, 4)

    params = init_params(k_par, num_feats, out_chs)
    w_slab, b_slab = pack_params(params, num_feats, out_chs)

    x = jax.random.normal(k_x, (num_feats,), jnp.float32)
    node_feats = jax.random.normal(k_feat, (n_nodes, _GCN_IN), jnp.float32)
    # Random directed graph, no self loops.
    adj = (jax.random.uniform(k_adj, (n_nodes, n_nodes)) < 0.3).astype(jnp.float32)
    adj = adj * (1.0 - jnp.eye(n_nodes, dtype=jnp.float32))

    forward = make_forward(num_feats, out_chs)
    out = forward(x, node_feats, adj, w_slab, b_slab)
    jax.block_until_ready(out)

    ref = reference_forward(x, node_feats, adj, params)
    assert out.shape == (out_chs,)
    assert jnp.allclose(out, ref, atol=1e-4, rtol=1e-4), (out, ref)
    print("KERNEL_OK")
</pallas_src>

<mosaic_0001>
module attributes {stable_mosaic.version = 11 : i64} {
  func.func @_fc_model_graph_kernel(%arg0: memref<12x12xf32, #tpu.memory_space<vmem>>, %arg1: memref<12x6xf32, #tpu.memory_space<vmem>>, %arg2: memref<1x24xf32, #tpu.memory_space<vmem>>, %arg3: memref<128x128xf32, #tpu.memory_space<vmem>>, %arg4: memref<8x128xf32, #tpu.memory_space<vmem>>, %arg5: memref<1x128xf32, #tpu.memory_space<vmem>>) attributes {dimension_semantics = [], scalar_prefetch = 0 : i64, scratch_operands = 0 : i64, tpu.core_type = #tpu.core_type<tc>} {
    %c0 = arith.constant 0 : index
    %c0_0 = arith.constant 0 : index
    %0 = vector.load %arg0[%c0, %c0_0] : memref<12x12xf32, #tpu.memory_space<vmem>>, vector<12x12xf32>
    %cst = arith.constant dense<0.000000e+00> : vector<12xf32>
    %1 = vector.multi_reduction <add>, %0, %cst [0] : vector<12x12xf32> to vector<12xf32>
    %2 = vector.shape_cast %1 : vector<12xf32> to vector<1x12xf32>
    %cst_1 = arith.constant 1.000000e+00 : f32
    %3 = vector.broadcast %cst_1 : f32 to vector<1x12xf32>
    %4 = arith.maximumf %2, %3 : vector<1x12xf32>
    %cst_2 = arith.constant dense<0.000000e+00> : vector<12xf32>
    %5 = vector.multi_reduction <add>, %0, %cst_2 [1] : vector<12x12xf32> to vector<12xf32>
    %6 = vector.shape_cast %5 : vector<12xf32> to vector<12x1xf32>
    %cst_3 = arith.constant 1.000000e+00 : f32
    %7 = vector.broadcast %cst_3 : f32 to vector<12x1xf32>
    %8 = arith.maximumf %6, %7 : vector<12x1xf32>
    %9 = math.rsqrt %4 : vector<1x12xf32>
    %10 = vector.broadcast %9 : vector<1x12xf32> to vector<12x12xf32>
    %11 = arith.mulf %0, %10 : vector<12x12xf32>
    %12 = math.rsqrt %8 : vector<12x1xf32>
    %13 = vector.broadcast %12 : vector<12x1xf32> to vector<12x12xf32>
    %14 = arith.mulf %11, %13 : vector<12x12xf32>
    %c0_4 = arith.constant 0 : index
    %c0_5 = arith.constant 0 : index
    %15 = vector.load %arg1[%c0_4, %c0_5] : memref<12x6xf32, #tpu.memory_space<vmem>>, vector<12x6xf32>
    %c0_6 = arith.constant 0 : index
    %c0_7 = arith.constant 0 : index
    %16 = vector.load %arg3[%c0_6, %c0_7] : memref<128x128xf32, #tpu.memory_space<vmem>>, vector<6x12xf32>
    %cst_8 = arith.constant dense<0.000000e+00> : vector<12x12xf32>
    %17 = tpu.matmul %15, %16, %cst_8 {dimension_numbers = #tpu.dot_dimension_numbers<[1], [0], [0], [1], [0, 0, 1, 1], [], []>} : vector<12x6xf32>, vector<6x12xf32>, vector<12x12xf32> -> vector<12x12xf32>
    %cst_9 = arith.constant dense<0.000000e+00> : vector<12x12xf32>
    %18 = tpu.matmul %14, %17, %cst_9 {dimension_numbers = #tpu.dot_dimension_numbers<[1], [0], [0], [1], [0, 0, 1, 1], [], []>} : vector<12x12xf32>, vector<12x12xf32>, vector<12x12xf32> -> vector<12x12xf32>
    %c0_10 = arith.constant 0 : index
    %c0_11 = arith.constant 0 : index
    %19 = vector.load %arg4[%c0_10, %c0_11] : memref<8x128xf32, #tpu.memory_space<vmem>>, vector<1x12xf32>
    %20 = vector.broadcast %19 : vector<1x12xf32> to vector<12x12xf32>
    %21 = arith.addf %18, %20 : vector<12x12xf32>
    %cst_12 = arith.constant 0.000000e+00 : f32
    %22 = vector.broadcast %cst_12 : f32 to vector<12x12xf32>
    %23 = arith.maximumf %21, %22 : vector<12x12xf32>
    %c8 = arith.constant 8 : index
    %c0_13 = arith.constant 0 : index
    %24 = vector.load %arg3[%c8, %c0_13] : memref<128x128xf32, #tpu.memory_space<vmem>>, vector<12x12xf32>
    %cst_14 = arith.constant dense<0.000000e+00> : vector<12x12xf32>
    %25 = tpu.matmul %23, %24, %cst_14 {dimension_numbers = #tpu.dot_dimension_numbers<[1], [0], [0], [1], [0, 0, 1, 1], [], []>} : vector<12x12xf32>, vector<12x12xf32>, vector<12x12xf32> -> vector<12x12xf32>
    %cst_15 = arith.constant dense<0.000000e+00> : vector<12x12xf32>
    %26 = tpu.matmul %14, %25, %cst_15 {dimension_numbers = #tpu.dot_dimension_numbers<[1], [0], [0], [1], [0, 0, 1, 1], [], []>} : vector<12x12xf32>, vector<12x12xf32>, vector<12x12xf32> -> vector<12x12xf32>
    %c1 = arith.constant 1 : index
    %c0_16 = arith.constant 0 : index
    %27 = vector.load %arg4[%c1, %c0_16] : memref<8x128xf32, #tpu.memory_space<vmem>>, vector<1x12xf32>
    %28 = vector.broadcast %27 : vector<1x12xf32> to vector<12x12xf32>
    %29 = arith.addf %26, %28 : vector<12x12xf32>
    %cst_17 = arith.constant 0.000000e+00 : f32
    %30 = vector.broadcast %cst_17 : f32 to vector<12x12xf32>
    %31 = arith.maximumf %29, %30 : vector<12x12xf32>
    %cst_18 = arith.constant dense<0.000000e+00> : vector<12xf32>
    %32 = vector.multi_reduction <add>, %14, %cst_18 [0] : vector<12x12xf32> to vector<12xf32>
    %33 = vector.shape_cast %32 : vector<12xf32> to vector<1x12xf32>
    %cst_19 = arith.constant 1.200000e+01 : f32
    %34 = vector.broadcast %cst_19 : f32 to vector<1x12xf32>
    %35 = arith.divf %33, %34 : vector<1x12xf32>
    %cst_20 = arith.constant dense<0.000000e+00> : vector<1x12xf32>
    %36 = tpu.matmul %35, %31, %cst_20 {dimension_numbers = #tpu.dot_dimension_numbers<[1], [0], [0], [1], [0, 0, 1, 1], [], []>} : vector<1x12xf32>, vector<12x12xf32>, vector<1x12xf32> -> vector<1x12xf32>
    %c24 = arith.constant 24 : index
    %c0_21 = arith.constant 0 : index
    %37 = vector.load %arg3[%c24, %c0_21] : memref<128x128xf32, #tpu.memory_space<vmem>>, vector<12x32xf32>
    %cst_22 = arith.constant dense<0.000000e+00> : vector<1x32xf32>
    %38 = tpu.matmul %36, %37, %cst_22 {dimension_numbers = #tpu.dot_dimension_numbers<[1], [0], [0], [1], [0, 0, 1, 1], [], []>} : vector<1x12xf32>, vector<12x32xf32>, vector<1x32xf32> -> vector<1x32xf32>
    %c0_23 = arith.constant 0 : index
    %c0_24 = arith.constant 0 : index
    %39 = vector.load %arg2[%c0_23, %c0_24] : memref<1x24xf32, #tpu.memory_space<vmem>>, vector<1x24xf32>
    %c40 = arith.constant 40 : index
    %c0_25 = arith.constant 0 : index
    %40 = vector.load %arg3[%c40, %c0_25] : memref<128x128xf32, #tpu.memory_space<vmem>>, vector<24x28xf32>
    %cst_26 = arith.constant dense<0.000000e+00> : vector<1x28xf32>
    %41 = tpu.matmul %39, %40, %cst_26 {dimension_numbers = #tpu.dot_dimension_numbers<[1], [0], [0], [1], [0, 0, 1, 1], [], []>} : vector<1x24xf32>, vector<24x28xf32>, vector<1x28xf32> -> vector<1x28xf32>
    %c2 = arith.constant 2 : index
    %c0_27 = arith.constant 0 : index
    %42 = vector.load %arg4[%c2, %c0_27] : memref<8x128xf32, #tpu.memory_space<vmem>>, vector<1x28xf32>
    %43 = arith.addf %41, %42 : vector<1x28xf32>
    %cst_28 = arith.constant 0.000000e+00 : f32
    %44 = vector.broadcast %cst_28 : f32 to vector<1x28xf32>
    %45 = arith.maximumf %43, %44 : vector<1x28xf32>
    %c64 = arith.constant 64 : index
    %c0_29 = arith.constant 0 : index
    %46 = vector.load %arg3[%c64, %c0_29] : memref<128x128xf32, #tpu.memory_space<vmem>>, vector<28x32xf32>
    %cst_30 = arith.constant dense<0.000000e+00> : vector<1x32xf32>
    %47 = tpu.matmul %45, %46, %cst_30 {dimension_numbers = #tpu.dot_dimension_numbers<[1], [0], [0], [1], [0, 0, 1, 1], [], []>} : vector<1x28xf32>, vector<28x32xf32>, vector<1x32xf32> -> vector<1x32xf32>
    %48 = arith.addf %47, %38 : vector<1x32xf32>
    %c3 = arith.constant 3 : index
    %c0_31 = arith.constant 0 : index
    %49 = vector.load %arg4[%c3, %c0_31] : memref<8x128xf32, #tpu.memory_space<vmem>>, vector<1x32xf32>
    %50 = arith.addf %48, %49 : vector<1x32xf32>
    %cst_32 = arith.constant 0.000000e+00 : f32
    %51 = vector.broadcast %cst_32 : f32 to vector<1x32xf32>
    %52 = arith.maximumf %50, %51 : vector<1x32xf32>
    %c96 = arith.constant 96 : index
    %c0_33 = arith.constant 0 : index
    %53 = vector.load %arg3[%c96, %c0_33] : memref<128x128xf32, #tpu.memory_space<vmem>>, vector<32x128xf32>
    %cst_34 = arith.constant dense<0.000000e+00> : vector<1x128xf32>
    %54 = tpu.matmul %52, %53, %cst_34 {dimension_numbers = #tpu.dot_dimension_numbers<[1], [0], [0], [1], [0, 0, 1, 1], [], []>} : vector<1x32xf32>, vector<32x128xf32>, vector<1x128xf32> -> vector<1x128xf32>
    %c4 = arith.constant 4 : index
    %c0_35 = arith.constant 0 : index
    %55 = vector.load %arg4[%c4, %c0_35] : memref<8x128xf32, #tpu.memory_space<vmem>>, vector<1x128xf32>
    %56 = arith.addf %54, %55 : vector<1x128xf32>
    %c0_36 = arith.constant 0 : index
    %c0_37 = arith.constant 0 : index
    %57 = vector.load %arg5[%c0_36, %c0_37] : memref<1x128xf32, #tpu.memory_space<vmem>>, vector<1x128xf32>
    tpu.vector_store %arg5[%c0_36, %c0_37], %56 {strides = array<i32>} : memref<1x128xf32, #tpu.memory_space<vmem>>, vector<1x128xf32>,
    return
  }
}

</mosaic_0001>

<llo_original>
// kernel: forward.1
$region0: #{forward.1}
  #allocation0 [shape = 'u32[]', space=smem, size = 0x4, offset = 0x4, fixed_abs, tag = 'smem constant byte address 0x4 - core index']
  #allocation1 [shape = 'u32[144,128]{1,0:T(1,128)}', space=vmem, size = 0x12000, scoped, tag = 'internal scratch']
  %s0 = inlined_call_operand.vmem [shape: f32[12,12], index: 0, kind: input, shape index: {}]
  %s1 = inlined_call_operand.vmem [shape: f32[12,6], index: 1, kind: input, shape index: {}]
  %s2 = inlined_call_operand.vmem [shape: f32[1,24], index: 2, kind: input, shape index: {}]
  %s3 = inlined_call_operand.hbm [shape: f32[128,128], index: 3, kind: input, shape index: {}]
  %s4 = inlined_call_operand.vmem [shape: f32[8,128], index: 4, kind: input, shape index: {}]
  %s5 = inlined_call_operand.vmem [shape: f32[1,128], index: 5, kind: output, shape index: {}]
  %s6 = sld [smem:[#allocation0]]
  $region34: #{forward.1} parent=0
    _
  %s8 = ssub.s32 1, %s6
  %s9 = scalar_select 0, %s8, %s6
  $region1: #{forward.1} parent=0
    #allocation2 [shape = 'u8[65536]{0}', space=vmem, size = 0x10000, scoped, tag = 'input window, operand 3, single buffered']
    #allocation3 [shape = 's32[1]{0}', space=sflag, size = 0x4, scoped, tag = 'scoped memory for forward.1']
    %10 = vsyncpa [#allocation3], 0
    // Predicated region
    $region2: #{forward.1} parent=1 // pred_check
      _
    $region3: #{forward.1} parent=1 // pred_check_branch
      %12 = sbr.rel (0) target = $region5
    $region4: #{forward.1} parent=1 // pred_region
      _
    $region5: #{forward.1} parent=1 // pred_fallthru
      _
    // Predicated region
    $region6: #{forward.1} parent=1 // pred_check
      _
    $region7: #{forward.1} parent=1 // pred_check_branch
      %14 = sbr.rel (0) target = $region9
    $region8: #{forward.1} parent=1 // pred_region
      _
    $region9: #{forward.1} parent=1 // pred_fallthru
      _
    // Predicated region
    $region10: #{forward.1} parent=1 // pred_check
      _
    $region11: #{forward.1} parent=1 // pred_check_branch
      %16 = sbr.rel (0) target = $region13
    $region12: #{forward.1} parent=1 // pred_region
      _
    $region13: #{forward.1} parent=1 // pred_fallthru
      _
    // Predicated region
    $region14: #{forward.1} parent=1 // pred_check
      _
    $region15: #{forward.1} parent=1 // pred_check_branch
      %18 = sbr.rel (0) target = $region17
    $region16: #{forward.1} parent=1 // pred_region
      %s20 = ssub.s32 2048, 2048
      %21 = vsyncadd [#allocation3], %s20
      %s22 = sshll.u32 [#allocation2], 4
      %s23 = int_to_ptr.vmem [resolvable:$true] %s22
      %28 = dma.hbm_to_vmem [thread:$0]  %s3, 2048, %s23, [#allocation3], 128, 128, 8
    $region17: #{forward.1} parent=1 // pred_fallthru
      _
    // Predicated region
    $region18: #{forward.1} parent=1 // pred_check
      _
    $region19: #{forward.1} parent=1 // pred_check_branch
      %30 = sbr.rel (0) target = $region21
    $region20: #{forward.1} parent=1 // pred_region
      _
    $region21: #{forward.1} parent=1 // pred_fallthru
      _
    // Predicated region
    $region22: #{forward.1} parent=1 // pred_check
      _
    $region23: #{forward.1} parent=1 // pred_check_branch
      %32 = sbr.rel (0) target = $region25
    $region24: #{forward.1} parent=1 // pred_region
      %33 = dma.done [#allocation3], 2048
    $region25: #{forward.1} parent=1 // pred_fallthru
      _
    %v34 = vld [vmem:[%s0] sm:$0xff]
    %v35 = vld [vmem:[%s0 + $0x8] sm:$0xf]
    %vm36 = vcmask 97280
    %v37 = vsel %vm36, %v34, 0.0
    %vm38 = vcmask 93184
    %v39 = vsel %vm38, %v35, 0.0
    %v40 = vadd.f32 %v37, %v39
    %v41 = vrot.slane %v40, 4
    %v42 = vadd.f32 %v40, %v41
    %v43 = vrot.slane %v42, 2
    %v44 = vadd.f32 %v42, %v43
    %v45 = vrot.slane %v44, 1
    %v46 = vadd.f32 %v44, %v45
    %v47 = vmax.f32 %v46, 1.0
    %48 = vadd.xlane.f32.xlu0 %v37
    %v49 = vpop.xlane.xlu0 %48
    %50 = vadd.xlane.f32.xlu0 %v39
    %v51 = vpop.xlane.xlu0 %50
    %v52 = vmax.f32 %v49, 1.0
    %v53 = vmax.f32 %v51, 1.0
    %v54 = vrsqrt.pop %v47
    %v55 = vmul.f32 %v34, %v54
    %v56 = vmul.f32 %v35, %v54
    %v57 = vrsqrt.pop %v52
    %v58 = vrsqrt.pop %v53
    %v59 = vmul.f32 %v55, %v57
    %v60 = vmul.f32 %v56, %v58
    %v61 = vld [vmem:[%s1] sm:$0xff]
    %v62 = vld [vmem:[%s1 + $0x8] sm:$0xf]
    %v63 = vld [vmem:[#allocation2] sm:$0x3f]
    %vm64 = vcmask 48128
    %v66 = vsel %vm64, %v61, 0
    %v69 = vsel %vm64, %v62, 0
    %vm71 = vcmask 1045504
    %v73 = vsel %vm71, %v63, 0
    %75 = vmatprep.subr.mxu0 0.0
    %76 = vmatpush1.msra.mxu0 %v73
    %77 = vmatprep.subr.mxu0 0.0
    %78 = vmatpush1.msra.mxu0 0.0
    %79 = vmatprep.subr.mxu0 0.0
    %80 = vmatpush1.msra.mxu0 0.0
    %81 = vmatprep.subr.mxu0 0.0
    %82 = vmatpush1.msra.mxu0 0.0
    %83 = vmatprep.subr.mxu0 0.0
    %84 = vmatpush1.msra.mxu0 0.0
    %85 = vmatprep.subr.mxu0 0.0
    %86 = vmatpush1.msra.mxu0 0.0
    %87 = vmatprep.subr.mxu0 0.0
    %88 = vmatpush1.msra.mxu0 0.0
    %89 = vmatprep.subr.mxu0 0.0
    %90 = vmatpush1.msra.mxu0 0.0
    %91 = vmatprep.subr.mxu0 0.0
    %92 = vmatpush1.msra.mxu0 0.0
    %93 = vmatprep.subr.mxu0 0.0
    %94 = vmatpush1.msra.mxu0 0.0
    %95 = vmatprep.subr.mxu0 0.0
    %96 = vmatpush1.msra.mxu0 0.0
    %97 = vmatprep.subr.mxu0 0.0
    %98 = vmatpush1.msra.mxu0 0.0
    %99 = vmatprep.subr.mxu0 0.0
    %100 = vmatpush1.msra.mxu0 0.0
    %101 = vmatprep.subr.mxu0 0.0
    %102 = vmatpush1.msra.mxu0 0.0
    %103 = vmatprep.subr.mxu0 0.0
    %104 = vmatpush1.msra.mxu0 0.0
    %105 = vmatprep.subr.mxu0 0.0
    %106 = vmatpush1.msra.mxu0 0.0
    %107 = vmatprep.subr.mxu0 0.0
    %108 = vmatpush1.msra.mxu0 0.0
    %109 = vmatprep.subr.mxu0 0.0
    %110 = vmatpush1.msra.mxu0 0.0
    %111 = vmatprep.subr.mxu0 0.0
    %112 = vmatpush1.msra.mxu0 0.0
    %113 = vmatprep.subr.mxu0 0.0
    %114 = vmatpush1.msra.mxu0 0.0
    %115 = vmatprep.subr.mxu0 0.0
    %116 = vmatpush1.msra.mxu0 0.0
    %117 = vmatprep.subr.mxu0 0.0
    %118 = vmatpush1.msra.mxu0 0.0
    %119 = vmatprep.subr.mxu0 0.0
    %120 = vmatpush1.msra.mxu0 0.0
    %121 = vmatprep.subr.mxu0 0.0
    %122 = vmatpush1.msra.mxu0 0.0
    %123 = vmatprep.subr.mxu0 0.0
    %124 = vmatpush1.msra.mxu0 0.0
    %125 = vmatprep.subr.mxu0 0.0
    %126 = vmatpush1.msra.mxu0 0.0
    %127 = vmatprep.subr.mxu0 0.0
    %128 = vmatpush1.msra.mxu0 0.0
    %129 = vmatprep.subr.mxu0 0.0
    %130 = vmatpush1.msra.mxu0 0.0
    %131 = vmatprep.subr.mxu0 0.0
    %132 = vmatpush1.msra.mxu0 0.0
    %133 = vmatprep.subr.mxu0 0.0
    %134 = vmatpush1.msra.mxu0 0.0
    %135 = vmatprep.subr.mxu0 0.0
    %136 = vmatpush1.msra.mxu0 0.0
    %137 = vmatprep.subr.mxu0 0.0
    %138 = vmatpush1.msra.mxu0 0.0
    %139 = vmatprep.mubr.f32.mxu0 0.0
    %140 = vmatmul.mubr.f32.gmra.mrb[0].mxu0 %v66
    %v141 = vpop.f32.mrb[0].mxu0
    %v142 = vadd.f32 0.0, %v141
    %v143 = vpop.f32.mrb[0].mxu0
    %144 = vmatprep.mubr.f32.mxu0 0.0
    %145 = vmatmul.mubr.f32.gmra.mrb[0].mxu0 %v69
    %v146 = vpop.f32.mrb[0].mxu0
    %v147 = vadd.f32 0.0, %v146
    %v148 = vpop.f32.mrb[0].mxu0
    %149 = vdwg.mxu0
    %v150 = vld [vmem:[%s4] sm:$0x1]
    %v151 = vlaneseq
    %v152 = vshrl.u32 %v151, 7
    %v153 = vsub.s32 0, %v152
    %v154 = vrot.slane %v150, %v153
    %v156 = vsel %vm36, %v59, 0
    %v159 = vsel %vm36, %v60, 0
    %vm161 = vcmask 1043456
    %v163 = vsel %vm161, %v147, 0
    %165 = vmatprep.subr.mxu0 0.0
    %166 = vmatpush1.msra.mxu0 %v142
    %167 = vmatprep.subr.mxu0 0.0
    %168 = vmatpush1.msra.mxu0 %v163
    %169 = vmatprep.subr.mxu0 0.0
    %170 = vmatpush1.msra.mxu0 0.0
    %171 = vmatprep.subr.mxu0 0.0
    %172 = vmatpush1.msra.mxu0 0.0
    %173 = vmatprep.subr.mxu0 0.0
    %174 = vmatpush1.msra.mxu0 0.0
    %175 = vmatprep.subr.mxu0 0.0
    %176 = vmatpush1.msra.mxu0 0.0
    %177 = vmatprep.subr.mxu0 0.0
    %178 = vmatpush1.msra.mxu0 0.0
    %179 = vmatprep.subr.mxu0 0.0
    %180 = vmatpush1.msra.mxu0 0.0
    %181 = vmatprep.subr.mxu0 0.0
    %182 = vmatpush1.msra.mxu0 0.0
    %183 = vmatprep.subr.mxu0 0.0
    %184 = vmatpush1.msra.mxu0 0.0
    %185 = vmatprep.subr.mxu0 0.0
    %186 = vmatpush1.msra.mxu0 0.0
    %187 = vmatprep.subr.mxu0 0.0
    %188 = vmatpush1.msra.mxu0 0.0
    %189 = vmatprep.subr.mxu0 0.0
    %190 = vmatpush1.msra.mxu0 0.0
    %191 = vmatprep.subr.mxu0 0.0
    %192 = vmatpush1.msra.mxu0 0.0
    %193 = vmatprep.subr.mxu0 0.0
    %194 = vmatpush1.msra.mxu0 0.0
    %195 = vmatprep.subr.mxu0 0.0
    %196 = vmatpush1.msra.mxu0 0.0
    %197 = vmatprep.subr.mxu0 0.0
    %198 = vmatpush1.msra.mxu0 0.0
    %199 = vmatprep.subr.mxu0 0.0
    %200 = vmatpush1.msra.mxu0 0.0
    %201 = vmatprep.subr.mxu0 0.0
    %202 = vmatpush1.msra.mxu0 0.0
    %203 = vmatprep.subr.mxu0 0.0
    %204 = vmatpush1.msra.mxu0 0.0
    %205 = vmatprep.subr.mxu0 0.0
    %206 = vmatpush1.msra.mxu0 0.0
    %207 = vmatprep.subr.mxu0 0.0
    %208 = vmatpush1.msra.mxu0 0.0
    %209 = vmatprep.subr.mxu0 0.0
    %210 = vmatpush1.msra.mxu0 0.0
    %211 = vmatprep.subr.mxu0 0.0
    %212 = vmatpush1.msra.mxu0 0.0
    %213 = vmatprep.subr.mxu0 0.0
    %214 = vmatpush1.msra.mxu0 0.0
    %215 = vmatprep.subr.mxu0 0.0
    %216 = vmatpush1.msra.mxu0 0.0
    %217 = vmatprep.subr.mxu0 0.0
    %218 = vmatpush1.msra.mxu0 0.0
    %219 = vmatprep.subr.mxu0 0.0
    %220 = vmatpush1.msra.mxu0 0.0
    %221 = vmatprep.subr.mxu0 0.0
    %222 = vmatpush1.msra.mxu0 0.0
    %223 = vmatprep.subr.mxu0 0.0
    %224 = vmatpush1.msra.mxu0 0.0
    %225 = vmatprep.subr.mxu0 0.0
    %226 = vmatpush1.msra.mxu0 0.0
    %227 = vmatprep.subr.mxu0 0.0
    %228 = vmatpush1.msra.mxu0 0.0
    %229 = vmatprep.mubr.f32.mxu0 0.0
    %230 = vmatmul.mubr.f32.gmra.mrb[0].mxu0 %v156
    %v231 = vpop.f32.mrb[0].mxu0
    %v232 = vadd.f32 %v154, %v231
    %v233 = vpop.f32.mrb[0].mxu0
    %234 = vmatprep.mubr.f32.mxu0 0.0
    %235 = vmatmul.mubr.f32.gmra.mrb[0].mxu0 %v159
    %v236 = vpop.f32.mrb[0].mxu0
    %v237 = vadd.f32 %v154, %v236
    %v238 = vpop.f32.mrb[0].mxu0
    %239 = vdwg.mxu0
    %v240 = vmax.f32 %v232, 0.0
    %v241 = vmax.f32 %v237, 0.0
    %v242 = vld [vmem:[#allocation2 + $0x8] sm:$0xff]
    %v243 = vld [vmem:[#allocation2 + $0x10] sm:$0xf]
    %v245 = vsel %vm36, %v240, 0
    %v248 = vsel %vm36, %v241, 0
    %v251 = vsel %vm161, %v243, 0
    %253 = vmatprep.subr.mxu0 0.0
    %254 = vmatpush1.msra.mxu0 %v242
    %255 = vmatprep.subr.mxu0 0.0
    %256 = vmatpush1.msra.mxu0 %v251
    %257 = vmatprep.subr.mxu0 0.0
    %258 = vmatpush1.msra.mxu0 0.0
    %259 = vmatprep.subr.mxu0 0.0
    %260 = vmatpush1.msra.mxu0 0.0
    %261 = vmatprep.subr.mxu0 0.0
    %262 = vmatpush1.msra.mxu0 0.0
    %263 = vmatprep.subr.mxu0 0.0
    %264 = vmatpush1.msra.mxu0 0.0
    %265 = vmatprep.subr.mxu0 0.0
    %266 = vmatpush1.msra.mxu0 0.0
    %267 = vmatprep.subr.mxu0 0.0
    %268 = vmatpush1.msra.mxu0 0.0
    %269 = vmatprep.subr.mxu0 0.0
    %270 = vmatpush1.msra.mxu0 0.0
    %271 = vmatprep.subr.mxu0 0.0
    %272 = vmatpush1.msra.mxu0 0.0
    %273 = vmatprep.subr.mxu0 0.0
    %274 = vmatpush1.msra.mxu0 0.0
    %275 = vmatprep.subr.mxu0 0.0
    %276 = vmatpush1.msra.mxu0 0.0
    %277 = vmatprep.subr.mxu0 0.0
    %278 = vmatpush1.msra.mxu0 0.0
    %279 = vmatprep.subr.mxu0 0.0
    %280 = vmatpush1.msra.mxu0 0.0
    %281 = vmatprep.subr.mxu0 0.0
    %282 = vmatpush1.msra.mxu0 0.0
    %283 = vmatprep.subr.mxu0 0.0
    %284 = vmatpush1.msra.mxu0 0.0
    %285 = vmatprep.subr.mxu0 0.0
    %286 = vmatpush1.msra.mxu0 0.0
    %287 = vmatprep.subr.mxu0 0.0
    %288 = vmatpush1.msra.mxu0 0.0
    %289 = vmatprep.subr.mxu0 0.0
    %290 = vmatpush1.msra.mxu0 0.0
    %291 = vmatprep.subr.mxu0 0.0
    %292 = vmatpush1.msra.mxu0 0.0
    %293 = vmatprep.subr.mxu0 0.0
    %294 = vmatpush1.msra.mxu0 0.0
    %295 = vmatprep.subr.mxu0 0.0
    %296 = vmatpush1.msra.mxu0 0.0
    %297 = vmatprep.subr.mxu0 0.0
    %298 = vmatpush1.msra.mxu0 0.0
    %299 = vmatprep.subr.mxu0 0.0
    %300 = vmatpush1.msra.mxu0 0.0
    %301 = vmatprep.subr.mxu0 0.0
    %302 = vmatpush1.msra.mxu0 0.0
    %303 = vmatprep.subr.mxu0 0.0
    %304 = vmatpush1.msra.mxu0 0.0
    %305 = vmatprep.subr.mxu0 0.0
    %306 = vmatpush1.msra.mxu0 0.0
    %307 = vmatprep.subr.mxu0 0.0
    %308 = vmatpush1.msra.mxu0 0.0
    %309 = vmatprep.subr.mxu0 0.0
    %310 = vmatpush1.msra.mxu0 0.0
    %311 = vmatprep.subr.mxu0 0.0
    %312 = vmatpush1.msra.mxu0 0.0
    %313 = vmatprep.subr.mxu0 0.0
    %314 = vmatpush1.msra.mxu0 0.0
    %315 = vmatprep.subr.mxu0 0.0
    %316 = vmatpush1.msra.mxu0 0.0
    %317 = vmatprep.mubr.f32.mxu0 0.0
    %318 = vmatmul.mubr.f32.gmra.mrb[0].mxu0 %v245
    %v319 = vpop.f32.mrb[0].mxu0
    %v320 = vadd.f32 0.0, %v319
    %v321 = vpop.f32.mrb[0].mxu0
    %322 = vmatprep.mubr.f32.mxu0 0.0
    %323 = vmatmul.mubr.f32.gmra.mrb[0].mxu0 %v248
    %v324 = vpop.f32.mrb[0].mxu0
    %v325 = vadd.f32 0.0, %v324
    %v326 = vpop.f32.mrb[0].mxu0
    %327 = vdwg.mxu0
    %v328 = vld [vmem:[%s4 + $0x1] sm:$0x1]
    %v329 = vlaneseq
    %v330 = vshrl.u32 %v329, 7
    %v331 = vsub.s32 0, %v330
    %v332 = vrot.slane %v328, %v331
    %v334 = vsel %vm161, %v325, 0
    %336 = vmatprep.subr.mxu0 0.0
    %337 = vmatpush1.msra.mxu0 %v320
    %338 = vmatprep.subr.mxu0 0.0
    %339 = vmatpush1.msra.mxu0 %v334
    %340 = vmatprep.subr.mxu0 0.0
    %341 = vmatpush1.msra.mxu0 0.0
    %342 = vmatprep.subr.mxu0 0.0
    %343 = vmatpush1.msra.mxu0 0.0
    %344 = vmatprep.subr.mxu0 0.0
    %345 = vmatpush1.msra.mxu0 0.0
    %346 = vmatprep.subr.mxu0 0.0
    %347 = vmatpush1.msra.mxu0 0.0
    %348 = vmatprep.subr.mxu0 0.0
    %349 = vmatpush1.msra.mxu0 0.0
    %350 = vmatprep.subr.mxu0 0.0
    %351 = vmatpush1.msra.mxu0 0.0
    %352 = vmatprep.subr.mxu0 0.0
    %353 = vmatpush1.msra.mxu0 0.0
    %354 = vmatprep.subr.mxu0 0.0
    %355 = vmatpush1.msra.mxu0 0.0
    %356 = vmatprep.subr.mxu0 0.0
    %357 = vmatpush1.msra.mxu0 0.0
    %358 = vmatprep.subr.mxu0 0.0
    %359 = vmatpush1.msra.mxu0 0.0
    %360 = vmatprep.subr.mxu0 0.0
    %361 = vmatpush1.msra.mxu0 0.0
    %362 = vmatprep.subr.mxu0 0.0
    %363 = vmatpush1.msra.mxu0 0.0
    %364 = vmatprep.subr.mxu0 0.0
    %365 = vmatpush1.msra.mxu0 0.0
    %366 = vmatprep.subr.mxu0 0.0
    %367 = vmatpush1.msra.mxu0 0.0
    %368 = vmatprep.subr.mxu0 0.0
    %369 = vmatpush1.msra.mxu0 0.0
    %370 = vmatprep.subr.mxu0 0.0
    %371 = vmatpush1.msra.mxu0 0.0
    %372 = vmatprep.subr.mxu0 0.0
    %373 = vmatpush1.msra.mxu0 0.0
    %374 = vmatprep.subr.mxu0 0.0
    %375 = vmatpush1.msra.mxu0 0.0
    %376 = vmatprep.subr.mxu0 0.0
    %377 = vmatpush1.msra.mxu0 0.0
    %378 = vmatprep.subr.mxu0 0.0
    %379 = vmatpush1.msra.mxu0 0.0
    %380 = vmatprep.subr.mxu0 0.0
    %381 = vmatpush1.msra.mxu0 0.0
    %382 = vmatprep.subr.mxu0 0.0
    %383 = vmatpush1.msra.mxu0 0.0
    %384 = vmatprep.subr.mxu0 0.0
    %385 = vmatpush1.msra.mxu0 0.0
    %386 = vmatprep.subr.mxu0 0.0
    %387 = vmatpush1.msra.mxu0 0.0
    %388 = vmatprep.subr.mxu0 0.0
    %389 = vmatpush1.msra.mxu0 0.0
    %390 = vmatprep.subr.mxu0 0.0
    %391 = vmatpush1.msra.mxu0 0.0
    %392 = vmatprep.subr.mxu0 0.0
    %393 = vmatpush1.msra.mxu0 0.0
    %394 = vmatprep.subr.mxu0 0.0
    %395 = vmatpush1.msra.mxu0 0.0
    %396 = vmatprep.subr.mxu0 0.0
    %397 = vmatpush1.msra.mxu0 0.0
    %398 = vmatprep.subr.mxu0 0.0
    %399 = vmatpush1.msra.mxu0 0.0
    %400 = vmatprep.mubr.f32.mxu0 0.0
    %401 = vmatmul.mubr.f32.gmra.mrb[0].mxu0 %v156
    %v402 = vpop.f32.mrb[0].mxu0
    %v403 = vadd.f32 %v332, %v402
    %v404 = vpop.f32.mrb[0].mxu0
    %405 = vmatprep.mubr.f32.mxu0 0.0
    %406 = vmatmul.mubr.f32.gmra.mrb[0].mxu0 %v159
    %v407 = vpop.f32.mrb[0].mxu0
    %v408 = vadd.f32 %v332, %v407
    %v409 = vpop.f32.mrb[0].mxu0
    %410 = vdwg.mxu0
    %v411 = vmax.f32 %v403, 0.0
    %v412 = vmax.f32 %v408, 0.0
    %v413 = vsel %vm36, %v59, 0.0
    %v414 = vsel %vm38, %v60, 0.0
    %v415 = vadd.f32 %v413, %v414
    %v416 = vrot.slane %v415, 4
    %v417 = vadd.f32 %v415, %v416
    %v418 = vrot.slane %v417, 2
    %v419 = vadd.f32 %v417, %v418
    %v420 = vrot.slane %v419, 1
    %v421 = vadd.f32 %v419, %v420
    %v422 = vrcp.pop 12.0
    %v423 = vmul.f32 %v421, %v422
    %v425 = vsel %vm36, %v423, 0
    %v428 = vsel %vm161, %v412, 0
    %430 = vmatprep.subr.mxu0 0.0
    %431 = vmatpush1.msra.mxu0 %v411
    %432 = vmatprep.subr.mxu0 0.0
    %433 = vmatpush1.msra.mxu0 %v428
    %434 = vmatprep.subr.mxu0 0.0
    %435 = vmatpush1.msra.mxu0 0.0
    %436 = vmatprep.subr.mxu0 0.0
    %437 = vmatpush1.msra.mxu0 0.0
    %438 = vmatprep.subr.mxu0 0.0
    %439 = vmatpush1.msra.mxu0 0.0
    %440 = vmatprep.subr.mxu0 0.0
    %441 = vmatpush1.msra.mxu0 0.0
    %442 = vmatprep.subr.mxu0 0.0
    %443 = vmatpush1.msra.mxu0 0.0
    %444 = vmatprep.subr.mxu0 0.0
    %445 = vmatpush1.msra.mxu0 0.0
    %446 = vmatprep.subr.mxu0 0.0
    %447 = vmatpush1.msra.mxu0 0.0
    %448 = vmatprep.subr.mxu0 0.0
    %449 = vmatpush1.msra.mxu0 0.0
    %450 = vmatprep.subr.mxu0 0.0
    %451 = vmatpush1.msra.mxu0 0.0
    %452 = vmatprep.subr.mxu0 0.0
    %453 = vmatpush1.msra.mxu0 0.0
    %454 = vmatprep.subr.mxu0 0.0
    %455 = vmatpush1.msra.mxu0 0.0
    %456 = vmatprep.subr.mxu0 0.0
    %457 = vmatpush1.msra.mxu0 0.0
    %458 = vmatprep.subr.mxu0 0.0
    %459 = vmatpush1.msra.mxu0 0.0
    %460 = vmatprep.subr.mxu0 0.0
    %461 = vmatpush1.msra.mxu0 0.0
    %462 = vmatprep.subr.mxu0 0.0
    %463 = vmatpush1.msra.mxu0 0.0
    %464 = vmatprep.subr.mxu0 0.0
    %465 = vmatpush1.msra.mxu0 0.0
    %466 = vmatprep.subr.mxu0 0.0
    %467 = vmatpush1.msra.mxu0 0.0
    %468 = vmatprep.subr.mxu0 0.0
    %469 = vmatpush1.msra.mxu0 0.0
    %470 = vmatprep.subr.mxu0 0.0
    %471 = vmatpush1.msra.mxu0 0.0
    %472 = vmatprep.subr.mxu0 0.0
    %473 = vmatpush1.msra.mxu0 0.0
    %474 = vmatprep.subr.mxu0 0.0
    %475 = vmatpush1.msra.mxu0 0.0
    %476 = vmatprep.subr.mxu0 0.0
    %477 = vmatpush1.msra.mxu0 0.0
    %478 = vmatprep.subr.mxu0 0.0
    %479 = vmatpush1.msra.mxu0 0.0
    %480 = vmatprep.subr.mxu0 0.0
    %481 = vmatpush1.msra.mxu0 0.0
    %482 = vmatprep.subr.mxu0 0.0
    %483 = vmatpush1.msra.mxu0 0.0
    %484 = vmatprep.subr.mxu0 0.0
    %485 = vmatpush1.msra.mxu0 0.0
    %486 = vmatprep.subr.mxu0 0.0
    %487 = vmatpush1.msra.mxu0 0.0
    %488 = vmatprep.subr.mxu0 0.0
    %489 = vmatpush1.msra.mxu0 0.0
    %490 = vmatprep.subr.mxu0 0.0
    %491 = vmatpush1.msra.mxu0 0.0
    %492 = vmatprep.subr.mxu0 0.0
    %493 = vmatpush1.msra.mxu0 0.0
    %494 = vmatprep.mubr.f32.mxu0 0.0
    %495 = vmatmul.mubr.f32.gmra.mrb[0].mxu0 %v425
    %v496 = vpop.f32.mrb[0].mxu0
    %v497 = vadd.f32 0.0, %v496
    %v498 = vpop.f32.mrb[0].mxu0
    %499 = vdwg.mxu0
    %v500 = vld [vmem:[#allocation2 + $0x18] sm:$0xff]
    %v501 = vld [vmem:[#allocation2 + $0x20] sm:$0xf]
    %v503 = vsel %vm36, %v497, 0
    %v506 = vsel %vm161, %v501, 0
    %508 = vmatprep.subr.mxu0 0.0
    %509 = vmatpush1.msra.mxu0 %v500
    %510 = vmatprep.subr.mxu0 0.0
    %511 = vmatpush1.msra.mxu0 %v506
    %512 = vmatprep.subr.mxu0 0.0
    %513 = vmatpush1.msra.mxu0 0.0
    %514 = vmatprep.subr.mxu0 0.0
    %515 = vmatpush1.msra.mxu0 0.0
    %516 = vmatprep.subr.mxu0 0.0
    %517 = vmatpush1.msra.mxu0 0.0
    %518 = vmatprep.subr.mxu0 0.0
    %519 = vmatpush1.msra.mxu0 0.0
    %520 = vmatprep.subr.mxu0 0.0
    %521 = vmatpush1.msra.mxu0 0.0
    %522 = vmatprep.subr.mxu0 0.0
    %523 = vmatpush1.msra.mxu0 0.0
    %524 = vmatprep.subr.mxu0 0.0
    %525 = vmatpush1.msra.mxu0 0.0
    %526 = vmatprep.subr.mxu0 0.0
    %527 = vmatpush1.msra.mxu0 0.0
    %528 = vmatprep.subr.mxu0 0.0
    %529 = vmatpush1.msra.mxu0 0.0
    %530 = vmatprep.subr.mxu0 0.0
    %531 = vmatpush1.msra.mxu0 0.0
    %532 = vmatprep.subr.mxu0 0.0
    %533 = vmatpush1.msra.mxu0 0.0
    %534 = vmatprep.subr.mxu0 0.0
    %535 = vmatpush1.msra.mxu0 0.0
    %536 = vmatprep.subr.mxu0 0.0
    %537 = vmatpush1.msra.mxu0 0.0
    %538 = vmatprep.subr.mxu0 0.0
    %539 = vmatpush1.msra.mxu0 0.0
    %540 = vmatprep.subr.mxu0 0.0
    %541 = vmatpush1.msra.mxu0 0.0
    %542 = vmatprep.subr.mxu0 0.0
    %543 = vmatpush1.msra.mxu0 0.0
    %544 = vmatprep.subr.mxu0 0.0
    %545 = vmatpush1.msra.mxu0 0.0
    %546 = vmatprep.subr.mxu0 0.0
    %547 = vmatpush1.msra.mxu0 0.0
    %548 = vmatprep.subr.mxu0 0.0
    %549 = vmatpush1.msra.mxu0 0.0
    %550 = vmatprep.subr.mxu0 0.0
    %551 = vmatpush1.msra.mxu0 0.0
    %552 = vmatprep.subr.mxu0 0.0
    %553 = vmatpush1.msra.mxu0 0.0
    %554 = vmatprep.subr.mxu0 0.0
    %555 = vmatpush1.msra.mxu0 0.0
    %556 = vmatprep.subr.mxu0 0.0
    %557 = vmatpush1.msra.mxu0 0.0
    %558 = vmatprep.subr.mxu0 0.0
    %559 = vmatpush1.msra.mxu0 0.0
    %560 = vmatprep.subr.mxu0 0.0
    %561 = vmatpush1.msra.mxu0 0.0
    %562 = vmatprep.subr.mxu0 0.0
    %563 = vmatpush1.msra.mxu0 0.0
    %564 = vmatprep.subr.mxu0 0.0
    %565 = vmatpush1.msra.mxu0 0.0
    %566 = vmatprep.subr.mxu0 0.0
    %567 = vmatpush1.msra.mxu0 0.0
    %568 = vmatprep.subr.mxu0 0.0
    %569 = vmatpush1.msra.mxu0 0.0
    %570 = vmatprep.subr.mxu0 0.0
    %571 = vmatpush1.msra.mxu0 0.0
    %572 = vmatprep.mubr.f32.mxu0 0.0
    %573 = vmatmul.mubr.f32.gmra.mrb[0].mxu0 %v503
    %v574 = vpop.f32.mrb[0].mxu0
    %v575 = vadd.f32 0.0, %v574
    %v576 = vpop.f32.mrb[0].mxu0
    %577 = vdwg.mxu0
    %v578 = vld [vmem:[%s2] sm:$0x1]
    %v579 = vld [vmem:[#allocation2 + $0x28] sm:$0xff]
    %v580 = vld [vmem:[#allocation2 + $0x30] sm:$0xff]
    %v581 = vld [vmem:[#allocation2 + $0x38] sm:$0xff]
    %v582 = vld [vmem:[%s4 + $0x2] sm:$0x1]
    %vm583 = vcmask 195584
    %v585 = vsel %vm583, %v578, 0
    %587 = vmatprep.subr.mxu0 0.0
    %588 = vmatpush1.msra.mxu0 %v579
    %589 = vmatprep.subr.mxu0 0.0
    %590 = vmatpush1.msra.mxu0 %v580
    %591 = vmatprep.subr.mxu0 0.0
    %592 = vmatpush1.msra.mxu0 %v581
    %593 = vmatprep.subr.mxu0 0.0
    %594 = vmatpush1.msra.mxu0 0.0
    %595 = vmatprep.subr.mxu0 0.0
    %596 = vmatpush1.msra.mxu0 0.0
    %597 = vmatprep.subr.mxu0 0.0
    %598 = vmatpush1.msra.mxu0 0.0
    %599 = vmatprep.subr.mxu0 0.0
    %600 = vmatpush1.msra.mxu0 0.0
    %601 = vmatprep.subr.mxu0 0.0
    %602 = vmatpush1.msra.mxu0 0.0
    %603 = vmatprep.subr.mxu0 0.0
    %604 = vmatpush1.msra.mxu0 0.0
    %605 = vmatprep.subr.mxu0 0.0
    %606 = vmatpush1.msra.mxu0 0.0
    %607 = vmatprep.subr.mxu0 0.0
    %608 = vmatpush1.msra.mxu0 0.0
    %609 = vmatprep.subr.mxu0 0.0
    %610 = vmatpush1.msra.mxu0 0.0
    %611 = vmatprep.subr.mxu0 0.0
    %612 = vmatpush1.msra.mxu0 0.0
    %613 = vmatprep.subr.mxu0 0.0
    %614 = vmatpush1.msra.mxu0 0.0
    %615 = vmatprep.subr.mxu0 0.0
    %616 = vmatpush1.msra.mxu0 0.0
    %617 = vmatprep.subr.mxu0 0.0
    %618 = vmatpush1.msra.mxu0 0.0
    %619 = vmatprep.subr.mxu0 0.0
    %620 = vmatpush1.msra.mxu0 0.0
    %621 = vmatprep.subr.mxu0 0.0
    %622 = vmatpush1.msra.mxu0 0.0
    %623 = vmatprep.subr.mxu0 0.0
    %624 = vmatpush1.msra.mxu0 0.0
    %625 = vmatprep.subr.mxu0 0.0
    %626 = vmatpush1.msra.mxu0 0.0
    %627 = vmatprep.subr.mxu0 0.0
    %628 = vmatpush1.msra.mxu0 0.0
    %629 = vmatprep.subr.mxu0 0.0
    %630 = vmatpush1.msra.mxu0 0.0
    %631 = vmatprep.subr.mxu0 0.0
    %632 = vmatpush1.msra.mxu0 0.0
    %633 = vmatprep.subr.mxu0 0.0
    %634 = vmatpush1.msra.mxu0 0.0
    %635 = vmatprep.subr.mxu0 0.0
    %636 = vmatpush1.msra.mxu0 0.0
    %637 = vmatprep.subr.mxu0 0.0
    %638 = vmatpush1.msra.mxu0 0.0
    %639 = vmatprep.subr.mxu0 0.0
    %640 = vmatpush1.msra.mxu0 0.0
    %641 = vmatprep.subr.mxu0 0.0
    %642 = vmatpush1.msra.mxu0 0.0
    %643 = vmatprep.subr.mxu0 0.0
    %644 = vmatpush1.msra.mxu0 0.0
    %645 = vmatprep.subr.mxu0 0.0
    %646 = vmatpush1.msra.mxu0 0.0
    %647 = vmatprep.subr.mxu0 0.0
    %648 = vmatpush1.msra.mxu0 0.0
    %649 = vmatprep.subr.mxu0 0.0
    %650 = vmatpush1.msra.mxu0 0.0
    %651 = vmatprep.mubr.f32.mxu0 0.0
    %652 = vmatmul.mubr.f32.gmra.mrb[0].mxu0 %v585
    %v653 = vpop.f32.mrb[0].mxu0
    %v654 = vadd.f32 %v582, %v653
    %v655 = vpop.f32.mrb[0].mxu0
    %656 = vdwg.mxu0
    %v657 = vmax.f32 %v654, 0.0
    %v658 = vld [vmem:[#allocation2 + $0x40] sm:$0xff]
    %v659 = vld [vmem:[#allocation2 + $0x48] sm:$0xff]
    %v660 = vld [vmem:[#allocation2 + $0x50] sm:$0xff]
    %v661 = vld [vmem:[#allocation2 + $0x58] sm:$0xf]
    %vm662 = vcmask 228352
    %v664 = vsel %vm662, %v657, 0
    %v667 = vsel %vm161, %v661, 0
    %669 = vmatprep.subr.mxu0 0.0
    %670 = vmatpush1.msra.mxu0 %v658
    %671 = vmatprep.subr.mxu0 0.0
    %672 = vmatpush1.msra.mxu0 %v659
    %673 = vmatprep.subr.mxu0 0.0
    %674 = vmatpush1.msra.mxu0 %v660
    %675 = vmatprep.subr.mxu0 0.0
    %676 = vmatpush1.msra.mxu0 %v667
    %677 = vmatprep.subr.mxu0 0.0
    %678 = vmatpush1.msra.mxu0 0.0
    %679 = vmatprep.subr.mxu0 0.0
    %680 = vmatpush1.msra.mxu0 0.0
    %681 = vmatprep.subr.mxu0 0.0
    %682 = vmatpush1.msra.mxu0 0.0
    %683 = vmatprep.subr.mxu0 0.0
    %684 = vmatpush1.msra.mxu0 0.0
    %685 = vmatprep.subr.mxu0 0.0
    %686 = vmatpush1.msra.mxu0 0.0
    %687 = vmatprep.subr.mxu0 0.0
    %688 = vmatpush1.msra.mxu0 0.0
    %689 = vmatprep.subr.mxu0 0.0
    %690 = vmatpush1.msra.mxu0 0.0
    %691 = vmatprep.subr.mxu0 0.0
    %692 = vmatpush1.msra.mxu0 0.0
    %693 = vmatprep.subr.mxu0 0.0
    %694 = vmatpush1.msra.mxu0 0.0
    %695 = vmatprep.subr.mxu0 0.0
    %696 = vmatpush1.msra.mxu0 0.0
    %697 = vmatprep.subr.mxu0 0.0
    %698 = vmatpush1.msra.mxu0 0.0
    %699 = vmatprep.subr.mxu0 0.0
    %700 = vmatpush1.msra.mxu0 0.0
    %701 = vmatprep.subr.mxu0 0.0
    %702 = vmatpush1.msra.mxu0 0.0
    %703 = vmatprep.subr.mxu0 0.0
    %704 = vmatpush1.msra.mxu0 0.0
    %705 = vmatprep.subr.mxu0 0.0
    %706 = vmatpush1.msra.mxu0 0.0
    %707 = vmatprep.subr.mxu0 0.0
    %708 = vmatpush1.msra.mxu0 0.0
    %709 = vmatprep.subr.mxu0 0.0
    %710 = vmatpush1.msra.mxu0 0.0
    %711 = vmatprep.subr.mxu0 0.0
    %712 = vmatpush1.msra.mxu0 0.0
    %713 = vmatprep.subr.mxu0 0.0
    %714 = vmatpush1.msra.mxu0 0.0
    %715 = vmatprep.subr.mxu0 0.0
    %716 = vmatpush1.msra.mxu0 0.0
    %717 = vmatprep.subr.mxu0 0.0
    %718 = vmatpush1.msra.mxu0 0.0
    %719 = vmatprep.subr.mxu0 0.0
    %720 = vmatpush1.msra.mxu0 0.0
    %721 = vmatprep.subr.mxu0 0.0
    %722 = vmatpush1.msra.mxu0 0.0
    %723 = vmatprep.subr.mxu0 0.0
    %724 = vmatpush1.msra.mxu0 0.0
    %725 = vmatprep.subr.mxu0 0.0
    %726 = vmatpush1.msra.mxu0 0.0
    %727 = vmatprep.subr.mxu0 0.0
    %728 = vmatpush1.msra.mxu0 0.0
    %729 = vmatprep.subr.mxu0 0.0
    %730 = vmatpush1.msra.mxu0 0.0
    %731 = vmatprep.subr.mxu0 0.0
    %732 = vmatpush1.msra.mxu0 0.0
    %733 = vmatprep.mubr.f32.mxu0 0.0
    %734 = vmatmul.mubr.f32.gmra.mrb[0].mxu0 %v664
    %v735 = vpop.f32.mrb[0].mxu0
    %v736 = vadd.f32 %v575, %v735
    %v737 = vpop.f32.mrb[0].mxu0
    %738 = vdwg.mxu0
    %v739 = vld [vmem:[%s4 + $0x3] sm:$0x1]
    %v740 = vadd.f32 %v736, %v739
    %v741 = vmax.f32 %v740, 0.0
    %v742 = vld [vmem:[#allocation2 + $0x60] sm:$0xff]
    %v743 = vld [vmem:[#allocation2 + $0x68] sm:$0xff]
    %v744 = vld [vmem:[#allocation2 + $0x70] sm:$0xff]
    %v745 = vld [vmem:[#allocation2 + $0x78] sm:$0xff]
    %v746 = vld [vmem:[%s4 + $0x4] sm:$0x1]
    %vm747 = vcmask 261120
    %v749 = vsel %vm747, %v741, 0
    %751 = vmatprep.subr.mxu0 0.0
    %752 = vmatpush1.msra.mxu0 %v742
    %753 = vmatprep.subr.mxu0 0.0
    %754 = vmatpush1.msra.mxu0 %v743
    %755 = vmatprep.subr.mxu0 0.0
    %756 = vmatpush1.msra.mxu0 %v744
    %757 = vmatprep.subr.mxu0 0.0
    %758 = vmatpush1.msra.mxu0 %v745
    %759 = vmatprep.subr.mxu0 0.0
    %760 = vmatpush1.msra.mxu0 0.0
    %761 = vmatprep.subr.mxu0 0.0
    %762 = vmatpush1.msra.mxu0 0.0
    %763 = vmatprep.subr.mxu0 0.0
    %764 = vmatpush1.msra.mxu0 0.0
    %765 = vmatprep.subr.mxu0 0.0
    %766 = vmatpush1.msra.mxu0 0.0
    %767 = vmatprep.subr.mxu0 0.0
    %768 = vmatpush1.msra.mxu0 0.0
    %769 = vmatprep.subr.mxu0 0.0
    %770 = vmatpush1.msra.mxu0 0.0
    %771 = vmatprep.subr.mxu0 0.0
    %772 = vmatpush1.msra.mxu0 0.0
    %773 = vmatprep.subr.mxu0 0.0
    %774 = vmatpush1.msra.mxu0 0.0
    %775 = vmatprep.subr.mxu0 0.0
    %776 = vmatpush1.msra.mxu0 0.0
    %777 = vmatprep.subr.mxu0 0.0
    %778 = vmatpush1.msra.mxu0 0.0
    %779 = vmatprep.subr.mxu0 0.0
    %780 = vmatpush1.msra.mxu0 0.0
    %781 = vmatprep.subr.mxu0 0.0
    %782 = vmatpush1.msra.mxu0 0.0
    %783 = vmatprep.subr.mxu0 0.0
    %784 = vmatpush1.msra.mxu0 0.0
    %785 = vmatprep.subr.mxu0 0.0
    %786 = vmatpush1.msra.mxu0 0.0
    %787 = vmatprep.subr.mxu0 0.0
    %788 = vmatpush1.msra.mxu0 0.0
    %789 = vmatprep.subr.mxu0 0.0
    %790 = vmatpush1.msra.mxu0 0.0
    %791 = vmatprep.subr.mxu0 0.0
    %792 = vmatpush1.msra.mxu0 0.0
    %793 = vmatprep.subr.mxu0 0.0
    %794 = vmatpush1.msra.mxu0 0.0
    %795 = vmatprep.subr.mxu0 0.0
    %796 = vmatpush1.msra.mxu0 0.0
    %797 = vmatprep.subr.mxu0 0.0
    %798 = vmatpush1.msra.mxu0 0.0
    %799 = vmatprep.subr.mxu0 0.0
    %800 = vmatpush1.msra.mxu0 0.0
    %801 = vmatprep.subr.mxu0 0.0
    %802 = vmatpush1.msra.mxu0 0.0
    %803 = vmatprep.subr.mxu0 0.0
    %804 = vmatpush1.msra.mxu0 0.0
    %805 = vmatprep.subr.mxu0 0.0
    %806 = vmatpush1.msra.mxu0 0.0
    %807 = vmatprep.subr.mxu0 0.0
    %808 = vmatpush1.msra.mxu0 0.0
    %809 = vmatprep.subr.mxu0 0.0
    %810 = vmatpush1.msra.mxu0 0.0
    %811 = vmatprep.subr.mxu0 0.0
    %812 = vmatpush1.msra.mxu0 0.0
    %813 = vmatprep.subr.mxu0 0.0
    %814 = vmatpush1.msra.mxu0 0.0
    %815 = vmatprep.mubr.f32.mxu0 0.0
    %816 = vmatmul.mubr.f32.gmra.mrb[0].mxu0 %v749
    %v817 = vpop.f32.mrb[0].mxu0
    %v818 = vadd.f32 %v746, %v817
    %v819 = vpop.f32.mrb[0].mxu0
    %820 = vdwg.mxu0
    %821 = vst [vmem:[%s5] sm:$0x1] %v818
    // Predicated region
    $region26: #{forward.1} parent=1 // pred_check
      _
    $region27: #{forward.1} parent=1 // pred_check_branch
      %823 = sbr.rel (0) target = $region29
    $region28: #{forward.1} parent=1 // pred_region
      _
    $region29: #{forward.1} parent=1 // pred_fallthru
      _
    // Predicated region
    $region30: #{forward.1} parent=1 // pred_check
      _
    $region31: #{forward.1} parent=1 // pred_check_branch
      %825 = sbr.rel (0) target = $region33
    $region32: #{forward.1} parent=1 // pred_region
      _
    $region33: #{forward.1} parent=1 // pred_fallthru
      _
    %826 = vsyncpa [#allocation3], 1

</llo_original>
